<compile_context>
chip_gen: v7x
topology: tpu7x:2x2x1
jax: 0.10.0
libtpu: 0.0.40
codegen_flags: <defaults>
</compile_context>

<pallas_src>
import jax
import jax.numpy as jnp
from jax.experimental import pallas as pl
from jax.experimental.pallas import tpu as pltpu

DIM_IN = 4
HIDDEN = 128
DIM_OUT = 2


def simplenet_kernel(x_ref, p_ref, o_ref):
    # Packed parameter tile layout (rows of p_ref, shape [8, 128]):
    #   rows 0..DIM_IN-1            : w1            ([4, 128])
    #   row  DIM_IN                 : b1            ([1, 128])
    #   rows DIM_IN+1..DIM_IN+DIM_OUT : w2^T        ([2, 128])
    #   row  DIM_IN+DIM_OUT+1       : b2 (lanes 0..1, rest zero-padded)
    B = x_ref.shape[0]
    b1_row = DIM_IN
    w2t_row0 = DIM_IN + 1
    b2_row = DIM_IN + DIM_OUT + 1

    x = x_ref[...]                                         # [B, 4]

    # ---- Layer 1 on the VPU: accumulator starts at b1 (bias folded) ----
    h = jnp.broadcast_to(p_ref[b1_row:b1_row + 1, :], (B, HIDDEN))  # [B, 128]
    for k in range(DIM_IN):                                # K=4, fully unrolled
        h = h + x[:, k:k + 1] * p_ref[k:k + 1, :]          # [B,1]*[1,128] FMA
    h = jnp.maximum(h, 0.0)                                # ReLU (f32, VPU)

    # ---- Layer 2 (128 -> 2) as two lane reductions (XLU) ----
    cols = []
    for j in range(DIM_OUT):
        wj = p_ref[w2t_row0 + j:w2t_row0 + j + 1, :]       # [1, 128]
        cols.append(jnp.sum(h * wj, axis=-1, keepdims=True))  # [B, 1]
    b2_full = p_ref[b2_row:b2_row + 1, :]                  # [1, 128]
    logits = jnp.concatenate(cols, axis=-1) + b2_full[:, :DIM_OUT]  # [B, 2]

    # ---- softmax over dim 0 (batch axis), matching F.softmax(l2, dim=0) ----
    m = jnp.max(logits, axis=0, keepdims=True)             # [1, 2]
    e = jnp.exp(logits - m)
    o_ref[...] = e / jnp.sum(e, axis=0, keepdims=True)     # [B, 2]


def pack_params(w1, b1, w2, b2):
    """One-time host-side packing of all params into a single (8,128) tile."""
    b2_padded = jnp.zeros((1, HIDDEN), jnp.float32)
    b2_padded = b2_padded.at[0, :DIM_OUT].set(b2.reshape(-1))
    packed = jnp.concatenate(
        [w1,                        # [4, 128]
         b1.reshape(1, HIDDEN),     # [1, 128]
         w2.T,                      # [2, 128]
         b2_padded],                # [1, 128]
        axis=0)
    assert packed.shape == (DIM_IN + 1 + DIM_OUT + 1, HIDDEN)  # (8, 128)
    return packed


def simplenet_forward(x, packed_params):
    B = x.shape[0]
    vmem = pl.BlockSpec(memory_space=pltpu.MemorySpace.VMEM)
    return pl.pallas_call(
        simplenet_kernel,
        out_shape=jax.ShapeDtypeStruct((B, DIM_OUT), jnp.float32),
        in_specs=[vmem, vmem],
        out_specs=vmem,
    )(x, packed_params)


def init_params(key):
    # Deterministic synthetic init (PyTorch-style uniform bounds), no checkpoint.
    k1, k2, k3, k4 = jax.random.split(key, 4)
    bound1 = 1.0 / jnp.sqrt(DIM_IN)
    bound2 = 1.0 / jnp.sqrt(HIDDEN)
    w1 = jax.random.uniform(k1, (DIM_IN, HIDDEN), jnp.float32, -bound1, bound1)
    b1 = jax.random.uniform(k2, (1, HIDDEN), jnp.float32, -bound1, bound1)
    w2 = jax.random.uniform(k3, (HIDDEN, DIM_OUT), jnp.float32, -bound2, bound2)
    b2 = jax.random.uniform(k4, (1, DIM_OUT), jnp.float32, -bound2, bound2)
    return w1, b1, w2, b2


if __name__ == "__main__":
    key = jax.random.PRNGKey(0)
    kx, kp = jax.random.split(key)

    B = 8  # multiple of 8 (sublane-friendly)
    x = jax.random.normal(kx, (B, DIM_IN), jnp.float32)
    w1, b1, w2, b2 = init_params(kp)
    packed = pack_params(w1, b1, w2, b2)   # one-time, outside the kernel

    out = simplenet_forward(x, packed)
    jax.block_until_ready(out)

    # Pure-JAX reference check of the same semantics.
    h = jnp.maximum(x @ w1 + b1, 0.0)
    logits = h @ w2 + b2
    ref = jax.nn.softmax(logits, axis=0)   # dim=0 softmax, as in the module
    assert out.shape == (B, DIM_OUT)
    assert jnp.allclose(out, ref, atol=1e-5), "mismatch vs reference"

    print("KERNEL_OK")
</pallas_src>

<mosaic_0001>
module attributes {stable_mosaic.version = 11 : i64} {
  func.func @simplenet_kernel(%arg0: memref<8x4xf32, #tpu.memory_space<vmem>>, %arg1: memref<8x128xf32, #tpu.memory_space<vmem>>, %arg2: memref<8x2xf32, #tpu.memory_space<vmem>>) attributes {dimension_semantics = [], scalar_prefetch = 0 : i64, scratch_operands = 0 : i64, tpu.core_type = #tpu.core_type<tc>} {
    %c0 = arith.constant 0 : index
    %c0_0 = arith.constant 0 : index
    %0 = vector.load %arg0[%c0, %c0_0] : memref<8x4xf32, #tpu.memory_space<vmem>>, vector<8x4xf32>
    %c4 = arith.constant 4 : index
    %c0_1 = arith.constant 0 : index
    %1 = vector.load %arg1[%c4, %c0_1] : memref<8x128xf32, #tpu.memory_space<vmem>>, vector<1x128xf32>
    %2 = vector.shape_cast %1 : vector<1x128xf32> to vector<1x128xf32>
    %3 = vector.broadcast %2 : vector<1x128xf32> to vector<8x128xf32>
    %4 = vector.extract_strided_slice %0 {offsets = [0, 0], sizes = [8, 1], strides = [1, 1]} : vector<8x4xf32> to vector<8x1xf32>
    %c0_2 = arith.constant 0 : index
    %c0_3 = arith.constant 0 : index
    %5 = vector.load %arg1[%c0_2, %c0_3] : memref<8x128xf32, #tpu.memory_space<vmem>>, vector<1x128xf32>
    %6 = vector.broadcast %4 : vector<8x1xf32> to vector<8x128xf32>
    %7 = vector.broadcast %5 : vector<1x128xf32> to vector<8x128xf32>
    %8 = arith.mulf %6, %7 : vector<8x128xf32>
    %9 = arith.addf %3, %8 : vector<8x128xf32>
    %10 = vector.extract_strided_slice %0 {offsets = [0, 1], sizes = [8, 1], strides = [1, 1]} : vector<8x4xf32> to vector<8x1xf32>
    %c1 = arith.constant 1 : index
    %c0_4 = arith.constant 0 : index
    %11 = vector.load %arg1[%c1, %c0_4] : memref<8x128xf32, #tpu.memory_space<vmem>>, vector<1x128xf32>
    %12 = vector.broadcast %10 : vector<8x1xf32> to vector<8x128xf32>
    %13 = vector.broadcast %11 : vector<1x128xf32> to vector<8x128xf32>
    %14 = arith.mulf %12, %13 : vector<8x128xf32>
    %15 = arith.addf %9, %14 : vector<8x128xf32>
    %16 = vector.extract_strided_slice %0 {offsets = [0, 2], sizes = [8, 1], strides = [1, 1]} : vector<8x4xf32> to vector<8x1xf32>
    %c2 = arith.constant 2 : index
    %c0_5 = arith.constant 0 : index
    %17 = vector.load %arg1[%c2, %c0_5] : memref<8x128xf32, #tpu.memory_space<vmem>>, vector<1x128xf32>
    %18 = vector.broadcast %16 : vector<8x1xf32> to vector<8x128xf32>
    %19 = vector.broadcast %17 : vector<1x128xf32> to vector<8x128xf32>
    %20 = arith.mulf %18, %19 : vector<8x128xf32>
    %21 = arith.addf %15, %20 : vector<8x128xf32>
    %22 = vector.extract_strided_slice %0 {offsets = [0, 3], sizes = [8, 1], strides = [1, 1]} : vector<8x4xf32> to vector<8x1xf32>
    %c3 = arith.constant 3 : index
    %c0_6 = arith.constant 0 : index
    %23 = vector.load %arg1[%c3, %c0_6] : memref<8x128xf32, #tpu.memory_space<vmem>>, vector<1x128xf32>
    %24 = vector.broadcast %22 : vector<8x1xf32> to vector<8x128xf32>
    %25 = vector.broadcast %23 : vector<1x128xf32> to vector<8x128xf32>
    %26 = arith.mulf %24, %25 : vector<8x128xf32>
    %27 = arith.addf %21, %26 : vector<8x128xf32>
    %cst = arith.constant 0.000000e+00 : f32
    %28 = vector.broadcast %cst : f32 to vector<8x128xf32>
    %29 = arith.maximumf %27, %28 : vector<8x128xf32>
    %c5 = arith.constant 5 : index
    %c0_7 = arith.constant 0 : index
    %30 = vector.load %arg1[%c5, %c0_7] : memref<8x128xf32, #tpu.memory_space<vmem>>, vector<1x128xf32>
    %31 = vector.broadcast %30 : vector<1x128xf32> to vector<8x128xf32>
    %32 = arith.mulf %29, %31 : vector<8x128xf32>
    %cst_8 = arith.constant dense<0.000000e+00> : vector<8xf32>
    %33 = vector.multi_reduction <add>, %32, %cst_8 [1] : vector<8x128xf32> to vector<8xf32>
    %34 = vector.shape_cast %33 : vector<8xf32> to vector<8x1xf32>
    %c6 = arith.constant 6 : index
    %c0_9 = arith.constant 0 : index
    %35 = vector.load %arg1[%c6, %c0_9] : memref<8x128xf32, #tpu.memory_space<vmem>>, vector<1x128xf32>
    %36 = vector.broadcast %35 : vector<1x128xf32> to vector<8x128xf32>
    %37 = arith.mulf %29, %36 : vector<8x128xf32>
    %cst_10 = arith.constant dense<0.000000e+00> : vector<8xf32>
    %38 = vector.multi_reduction <add>, %37, %cst_10 [1] : vector<8x128xf32> to vector<8xf32>
    %39 = vector.shape_cast %38 : vector<8xf32> to vector<8x1xf32>
    %c7 = arith.constant 7 : index
    %c0_11 = arith.constant 0 : index
    %40 = vector.load %arg1[%c7, %c0_11] : memref<8x128xf32, #tpu.memory_space<vmem>>, vector<1x128xf32>
    %41 = tpu.concatenate %34, %39 in 1 : vector<8x1xf32>, vector<8x1xf32> -> vector<8x2xf32>
    %42 = vector.extract_strided_slice %40 {offsets = [0, 0], sizes = [1, 2], strides = [1, 1]} : vector<1x128xf32> to vector<1x2xf32>
    %43 = vector.broadcast %42 : vector<1x2xf32> to vector<8x2xf32>
    %44 = arith.addf %41, %43 : vector<8x2xf32>
    %cst_12 = arith.constant dense<0xFF800000> : vector<2xf32>
    %45 = vector.multi_reduction <maximumf>, %44, %cst_12 [0] : vector<8x2xf32> to vector<2xf32>
    %46 = vector.shape_cast %45 : vector<2xf32> to vector<1x2xf32>
    %47 = vector.broadcast %46 : vector<1x2xf32> to vector<8x2xf32>
    %48 = arith.subf %44, %47 : vector<8x2xf32>
    %49 = math.exp %48 : vector<8x2xf32>
    %cst_13 = arith.constant dense<0.000000e+00> : vector<2xf32>
    %50 = vector.multi_reduction <add>, %49, %cst_13 [0] : vector<8x2xf32> to vector<2xf32>
    %51 = vector.shape_cast %50 : vector<2xf32> to vector<1x2xf32>
    %52 = vector.broadcast %51 : vector<1x2xf32> to vector<8x2xf32>
    %53 = arith.divf %49, %52 : vector<8x2xf32>
    %c0_14 = arith.constant 0 : index
    %c0_15 = arith.constant 0 : index
    %54 = vector.load %arg2[%c0_14, %c0_15] : memref<8x2xf32, #tpu.memory_space<vmem>>, vector<8x2xf32>
    tpu.vector_store %arg2[%c0_14, %c0_15], %53 {strides = array<i32>} : memref<8x2xf32, #tpu.memory_space<vmem>>, vector<8x2xf32>,
    return
  }
}

</mosaic_0001>

<llo_original>
// kernel: tpu_custom_call.1
$region0: #{tpu_custom_call.1}
  #allocation0 [shape = 'u32[]', space=smem, size = 0x4, offset = 0x4, fixed_abs, tag = 'smem constant byte address 0x4 - core index']
  #allocation1 [shape = 'u32[144,128]{1,0:T(1,128)}', space=vmem, size = 0x12000, scoped, tag = 'internal scratch']
  %s0 = inlined_call_operand.vmem [shape: f32[8,4], index: 0, kind: input, shape index: {}]
  %s1 = inlined_call_operand.vmem [shape: f32[8,128], index: 1, kind: input, shape index: {}]
  %s2 = inlined_call_operand.vmem [shape: f32[8,2], index: 2, kind: output, shape index: {}]
  %s3 = sld [smem:[#allocation0]]
  $region18: #{tpu_custom_call.1} parent=0
    _
  %s5 = ssub.s32 1, %s3
  %s6 = scalar_select 0, %s5, %s3
  // Predicated region
  $region2: #{tpu_custom_call.1} parent=0 // pred_check
    _
  $region3: #{tpu_custom_call.1} parent=0 // pred_check_branch
    %8 = sbr.rel (0) target = $region5
  $region4: #{tpu_custom_call.1} parent=0 // pred_region
    _
  $region5: #{tpu_custom_call.1} parent=0 // pred_fallthru
    _
  // Predicated region
  $region6: #{tpu_custom_call.1} parent=0 // pred_check
    _
  $region7: #{tpu_custom_call.1} parent=0 // pred_check_branch
    %10 = sbr.rel (0) target = $region9
  $region8: #{tpu_custom_call.1} parent=0 // pred_region
    _
  $region9: #{tpu_custom_call.1} parent=0 // pred_fallthru
    _
  %v11 = vld [vmem:[%s0] sm:$0xff]
  %v12 = vld [vmem:[%s1 + $0x4] sm:$0x1]
  %v13 = vlaneseq
  %v14 = vshrl.u32 %v13, 7
  %v15 = vsub.s32 0, %v14
  %v16 = vrot.slane %v12, %v15
  %v17 = vld [vmem:[%s1] sm:$0x1]
  %19 = vset.pattern.permute.xlu0 0
  %20 = vperm.xlu0 %19, %v11
  %v21 = vpop.permute.xlu0 %20
  %v23 = vlaneseq
  %v24 = vshrl.u32 %v23, 7
  %v25 = vsub.s32 0, %v24
  %v26 = vrot.slane %v17, %v25
  %v27 = vmul.f32 %v21, %v26
  %v28 = vadd.f32 %v16, %v27
  %v29 = vld [vmem:[%s1 + $0x1] sm:$0x1]
  %30 = vset.pattern.permute.xlu0 1
  %31 = vperm.xlu0 %30, %v11
  %v32 = vpop.permute.xlu0 %31
  %v34 = vlaneseq
  %v35 = vshrl.u32 %v34, 7
  %v36 = vsub.s32 0, %v35
  %v37 = vrot.slane %v29, %v36
  %v38 = vmul.f32 %v32, %v37
  %v39 = vadd.f32 %v28, %v38
  %v40 = vld [vmem:[%s1 + $0x2] sm:$0x1]
  %41 = vset.pattern.permute.xlu0 2
  %42 = vperm.xlu0 %41, %v11
  %v43 = vpop.permute.xlu0 %42
  %v45 = vlaneseq
  %v46 = vshrl.u32 %v45, 7
  %v47 = vsub.s32 0, %v46
  %v48 = vrot.slane %v40, %v47
  %v49 = vmul.f32 %v43, %v48
  %v50 = vadd.f32 %v39, %v49
  %v51 = vld [vmem:[%s1 + $0x3] sm:$0x1]
  %52 = vset.pattern.permute.xlu0 3
  %53 = vperm.xlu0 %52, %v11
  %v54 = vpop.permute.xlu0 %53
  %v56 = vlaneseq
  %v57 = vshrl.u32 %v56, 7
  %v58 = vsub.s32 0, %v57
  %v59 = vrot.slane %v51, %v58
  %v60 = vmul.f32 %v54, %v59
  %v61 = vadd.f32 %v50, %v60
  %v62 = vmax.f32 %v61, 0.0
  %v63 = vld [vmem:[%s1 + $0x5] sm:$0x1]
  %v64 = vlaneseq
  %v65 = vshrl.u32 %v64, 7
  %v66 = vsub.s32 0, %v65
  %v67 = vrot.slane %v63, %v66
  %v68 = vmul.f32 %v62, %v67
  %69 = vadd.xlane.f32.xlu0 %v68
  %v70 = vpop.xlane.xlu0 %69
  %v71 = vld [vmem:[%s1 + $0x6] sm:$0x1]
  %v72 = vlaneseq
  %v73 = vshrl.u32 %v72, 7
  %v74 = vsub.s32 0, %v73
  %v75 = vrot.slane %v71, %v74
  %v76 = vmul.f32 %v62, %v75
  %77 = vadd.xlane.f32.xlu0 %v76
  %v78 = vpop.xlane.xlu0 %77
  %v79 = vld [vmem:[%s1 + $0x7] sm:$0x1]
  %vm80 = vcmask 7168
  %v81 = vsel %vm80, %v70, %v78
  %v82 = vlaneseq
  %v83 = vshrl.u32 %v82, 7
  %v84 = vsub.s32 0, %v83
  %v85 = vrot.slane %v79, %v84
  %v86 = vadd.f32 %v81, %v85
  %vm87 = vcmask 15360
  %v88 = vsel %vm87, %v86, -inf
  %v89 = vrot.slane %v88, 4
  %v90 = vmax.f32 %v88, %v89
  %v91 = vrot.slane %v90, 2
  %v92 = vmax.f32 %v90, %v91
  %v93 = vrot.slane %v92, 1
  %v94 = vmax.f32 %v92, %v93
  %v95 = vsub.f32 %v86, %v94
  %v96 = vmul.f32 %v95, 1.442695
  %v97 = vpow.pop %v96
  %v98 = vsel %vm87, %v97, 0.0
  %v99 = vrot.slane %v98, 4
  %v100 = vadd.f32 %v98, %v99
  %v101 = vrot.slane %v100, 2
  %v102 = vadd.f32 %v100, %v101
  %v103 = vrot.slane %v102, 1
  %v104 = vadd.f32 %v102, %v103
  %v105 = vrcp.pop %v104
  %v106 = vmul.f32 %v97, %v105
  %107 = vst.msk [vmem:[%s2] sm:$0xff] %vm87, %v106
  // Predicated region
  $region10: #{tpu_custom_call.1} parent=0 // pred_check
    _
  $region11: #{tpu_custom_call.1} parent=0 // pred_check_branch
    %109 = sbr.rel (0) target = $region13
  $region12: #{tpu_custom_call.1} parent=0 // pred_region
    _
  $region13: #{tpu_custom_call.1} parent=0 // pred_fallthru
    _
  // Predicated region
  $region14: #{tpu_custom_call.1} parent=0 // pred_check
    _
  $region15: #{tpu_custom_call.1} parent=0 // pred_check_branch
    %111 = sbr.rel (0) target = $region17
  $region16: #{tpu_custom_call.1} parent=0 // pred_region
    _
  $region17: #{tpu_custom_call.1} parent=0 // pred_fallthru
    _

</llo_original>
